<compile_context>
chip_gen: v5e
topology: v5e:2x2
jax: 0.10.0
libtpu: 0.0.40
codegen_flags: <defaults>
</compile_context>

<pallas_src>
import functools

import jax
import jax.numpy as jnp
from jax.experimental import pallas as pl
from jax.experimental.pallas import tpu as pltpu


def _round_up(x, m):
    return (x + m - 1) // m * m


def _embedding_kernel(x_ref, w1_ref, b1_ref, w2_ref, b2_ref, o_ref):
    # x_ref:  (tm, input_dim)        rows on sublanes, features on lanes
    # w1_ref: (input_dim, emb_p)     (= W1.T, zero-padded cols to emb_p)
    # b1_ref: (1, emb_p)
    # w2_ref: (emb_p, emb_p)         (= W2.T, zero-padded rows + cols)
    # b2_ref: (1, emb_p)
    # o_ref:  (tm, emb_p)            lane-dense (emb_p multiple of 128)
    x = x_ref[...]

    h = jnp.dot(x, w1_ref[...], preferred_element_type=jnp.float32) + b1_ref[...]

    # Exact GELU (erf-based), matching torch.nn.GELU() default.
    inv_sqrt2 = jnp.float32(0.7071067811865476)
    h = 0.5 * h * (1.0 + jax.lax.erf(h * inv_sqrt2))

    o = jnp.dot(h, w2_ref[...], preferred_element_type=jnp.float32) + b2_ref[...]
    o_ref[...] = o.astype(o_ref.dtype)


@functools.partial(jax.jit, static_argnames=("input_dim", "tm"))
def embedding_forward(x, w1, b1, w2, b2, *, input_dim, tm=1024):
    """x: arbitrary shape whose trailing reshape gives (-1, input_dim).

    w1: (input_dim, emb_dim)  (= torch W1.T),  b1: (emb_dim,)
    w2: (emb_dim,  emb_dim)   (= torch W2.T),  b2: (emb_dim,)
    """
    x2d = x.reshape(-1, input_dim)                       # glue reshape (plain JAX)
    n = x2d.shape[0]
    emb_dim = w1.shape[1]

    # ---- lane-dense padding: emb_dim -> multiple of 128 (exact, zeros) ----
    emb_p = max(128, _round_up(emb_dim, 128))
    pad_e = emb_p - emb_dim
    w1_p = jnp.pad(w1, ((0, 0), (0, pad_e)))                          # zero cols
    b1_p = jnp.pad(b1.reshape(1, emb_dim), ((0, 0), (0, pad_e)))
    w2_p = jnp.pad(w2, ((0, pad_e), (0, pad_e)))                      # zero rows+cols
    b2_p = jnp.pad(b2.reshape(1, emb_dim), ((0, 0), (0, pad_e)))

    # ---- row tiling: large tile, clamped for tiny inputs, zero row padding ----
    n_min = _round_up(max(n, 1), 8)               # f32 sublane multiple
    tm_eff = min(_round_up(tm, 8), n_min)         # never bigger than the data
    n_pad = _round_up(n_min, tm_eff)              # whole number of tiles
    x_p = jnp.pad(x2d, ((0, n_pad - n), (0, 0)))  # padded rows are zeros (finite)

    grid = (n_pad // tm_eff,)

    # VMEM per step (double-buffered) at tm=1024, emb_p=128 is ~1.2 MiB -> well
    # under the default scoped VMEM limit on v5e/v6e/v7x.
    out = pl.pallas_call(
        _embedding_kernel,
        out_shape=jax.ShapeDtypeStruct((n_pad, emb_p), x2d.dtype),
        grid_spec=pltpu.PrefetchScalarGridSpec(
            num_scalar_prefetch=0,
            grid=grid,
            in_specs=[
                pl.BlockSpec((tm_eff, input_dim), lambda i: (i, 0)),   # x row tile
                pl.BlockSpec((input_dim, emb_p), lambda i: (0, 0)),    # W1.T (resident)
                pl.BlockSpec((1, emb_p), lambda i: (0, 0)),            # b1   (resident)
                pl.BlockSpec((emb_p, emb_p), lambda i: (0, 0)),        # W2.T (resident)
                pl.BlockSpec((1, emb_p), lambda i: (0, 0)),            # b2   (resident)
            ],
            out_specs=pl.BlockSpec((tm_eff, emb_p), lambda i: (i, 0)),  # lane-dense
        ),
        compiler_params=pltpu.CompilerParams(
            dimension_semantics=("parallel",)),
    )(x_p, w1_p, b1_p, w2_p, b2_p)

    return out[:n, :emb_dim]


def init_params(key, input_dim, emb_dim, dtype=jnp.float32):
    """Deterministic synthetic init (PyTorch Linear default: U(-1/sqrt(in), 1/sqrt(in)))."""
    k1, k2, k3, k4 = jax.random.split(key, 4)
    lim1 = 1.0 / jnp.sqrt(input_dim)
    lim2 = 1.0 / jnp.sqrt(emb_dim)
    # Stored already transposed to (in, out) for the kernel.
    w1 = jax.random.uniform(k1, (input_dim, emb_dim), dtype, -lim1, lim1)
    b1 = jax.random.uniform(k2, (emb_dim,), dtype, -lim1, lim1)
    w2 = jax.random.uniform(k3, (emb_dim, emb_dim), dtype, -lim2, lim2)
    b2 = jax.random.uniform(k4, (emb_dim,), dtype, -lim2, lim2)
    return w1, b1, w2, b2


def reference_forward(x, w1, b1, w2, b2, input_dim):
    """Pure-JAX reference mirroring the PyTorch module (exact GELU)."""
    x2d = x.reshape(-1, input_dim).astype(jnp.float32)
    h = x2d @ w1.astype(jnp.float32) + b1
    h = 0.5 * h * (1.0 + jax.lax.erf(h * 0.7071067811865476))
    return h @ w2.astype(jnp.float32) + b2


if __name__ == "__main__":
    key = jax.random.PRNGKey(0)
    kx, kp = jax.random.split(key)

    input_dim = 4      # e.g. one-hot class / time-feature dim in the DDPM UNet
    emb_dim = 32
    batch = 8

    # x comes in with extra leading structure; forward() flattens to (-1, input_dim).
    x = jax.random.normal(kx, (batch, 1, input_dim), dtype=jnp.float32)

    w1, b1, w2, b2 = init_params(kp, input_dim, emb_dim)

    out = embedding_forward(x, w1, b1, w2, b2, input_dim=input_dim)
    out = jax.block_until_ready(out)

    ref = reference_forward(x, w1, b1, w2, b2, input_dim)
    assert out.shape == (batch, emb_dim), out.shape
    assert jnp.allclose(out, ref, atol=1e-5, rtol=1e-5), float(jnp.max(jnp.abs(out - ref)))

    print("KERNEL_OK")
</pallas_src>

<mosaic_0001>
module attributes {stable_mosaic.version = 11 : i64} {
  func.func @_embedding_kernel(%arg0: i32, %arg1: memref<8x4xf32, #tpu.memory_space<vmem>>, %arg2: memref<4x128xf32, #tpu.memory_space<vmem>>, %arg3: memref<1x128xf32, #tpu.memory_space<vmem>>, %arg4: memref<128x128xf32, #tpu.memory_space<vmem>>, %arg5: memref<1x128xf32, #tpu.memory_space<vmem>>, %arg6: memref<8x128xf32, #tpu.memory_space<vmem>>) attributes {dimension_semantics = [#tpu.dimension_semantics<parallel>], iteration_bounds = array<i64: 1>, scalar_prefetch = 0 : i64, scratch_operands = 0 : i64, tpu.core_type = #tpu.core_type<tc>, window_params = [{transform_indices = @transform_0, window_bounds = array<i64: 8, 4>}, {pipeline_mode = #tpu.pipeline_mode<synchronous>, transform_indices = @transform_1, window_bounds = array<i64: 4, 128>}, {pipeline_mode = #tpu.pipeline_mode<synchronous>, transform_indices = @transform_2, window_bounds = array<i64: 1, 128>}, {pipeline_mode = #tpu.pipeline_mode<synchronous>, transform_indices = @transform_3, window_bounds = array<i64: 128, 128>}, {pipeline_mode = #tpu.pipeline_mode<synchronous>, transform_indices = @transform_4, window_bounds = array<i64: 1, 128>}, {transform_indices = @transform_5, window_bounds = array<i64: 8, 128>}]} {
    %c0 = arith.constant 0 : index
    %c0_0 = arith.constant 0 : index
    %0 = vector.load %arg1[%c0, %c0_0] : memref<8x4xf32, #tpu.memory_space<vmem>>, vector<8x4xf32>
    %c0_1 = arith.constant 0 : index
    %c0_2 = arith.constant 0 : index
    %1 = vector.load %arg2[%c0_1, %c0_2] : memref<4x128xf32, #tpu.memory_space<vmem>>, vector<4x128xf32>
    %cst = arith.constant dense<0.000000e+00> : vector<8x128xf32>
    %2 = tpu.matmul %0, %1, %cst {dimension_numbers = #tpu.dot_dimension_numbers<[1], [0], [0], [1], [0, 0, 1, 1], [], []>} : vector<8x4xf32>, vector<4x128xf32>, vector<8x128xf32> -> vector<8x128xf32>
    %c0_3 = arith.constant 0 : index
    %c0_4 = arith.constant 0 : index
    %3 = vector.load %arg3[%c0_3, %c0_4] : memref<1x128xf32, #tpu.memory_space<vmem>>, vector<1x128xf32>
    %4 = vector.broadcast %3 : vector<1x128xf32> to vector<8x128xf32>
    %5 = arith.addf %2, %4 : vector<8x128xf32>
    %cst_5 = arith.constant 5.000000e-01 : f32
    %6 = vector.broadcast %cst_5 : f32 to vector<8x128xf32>
    %7 = arith.mulf %6, %5 : vector<8x128xf32>
    %cst_6 = arith.constant 0.707106769 : f32
    %8 = vector.broadcast %cst_6 : f32 to vector<8x128xf32>
    %9 = arith.mulf %5, %8 : vector<8x128xf32>
    %10 = math.erf %9 : vector<8x128xf32>
    %cst_7 = arith.constant 1.000000e+00 : f32
    %11 = vector.broadcast %cst_7 : f32 to vector<8x128xf32>
    %12 = arith.addf %11, %10 : vector<8x128xf32>
    %13 = arith.mulf %7, %12 : vector<8x128xf32>
    %c0_8 = arith.constant 0 : index
    %c0_9 = arith.constant 0 : index
    %14 = vector.load %arg4[%c0_8, %c0_9] : memref<128x128xf32, #tpu.memory_space<vmem>>, vector<128x128xf32>
    %cst_10 = arith.constant dense<0.000000e+00> : vector<8x128xf32>
    %15 = tpu.matmul %13, %14, %cst_10 {dimension_numbers = #tpu.dot_dimension_numbers<[1], [0], [0], [1], [0, 0, 1, 1], [], []>} : vector<8x128xf32>, vector<128x128xf32>, vector<8x128xf32> -> vector<8x128xf32>
    %c0_11 = arith.constant 0 : index
    %c0_12 = arith.constant 0 : index
    %16 = vector.load %arg5[%c0_11, %c0_12] : memref<1x128xf32, #tpu.memory_space<vmem>>, vector<1x128xf32>
    %17 = vector.broadcast %16 : vector<1x128xf32> to vector<8x128xf32>
    %18 = arith.addf %15, %17 : vector<8x128xf32>
    %c0_13 = arith.constant 0 : index
    %c0_14 = arith.constant 0 : index
    %19 = vector.load %arg6[%c0_13, %c0_14] : memref<8x128xf32, #tpu.memory_space<vmem>>, vector<8x128xf32>
    tpu.vector_store %arg6[%c0_13, %c0_14], %18 {strides = array<i32>} : memref<8x128xf32, #tpu.memory_space<vmem>>, vector<8x128xf32>,
    return
  }
  func.func @transform_0(%arg0: i32) -> (i32, i32) {
    %c0_i32 = arith.constant 0 : i32
    %c0_i32_0 = arith.constant 0 : i32
    return %arg0, %c0_i32 : i32, i32
  }
  func.func @transform_1(%arg0: i32) -> (i32, i32) {
    %c0_i32 = arith.constant 0 : i32
    %c0_i32_0 = arith.constant 0 : i32
    %c0_i32_1 = arith.constant 0 : i32
    return %c0_i32, %c0_i32_0 : i32, i32
  }
  func.func @transform_2(%arg0: i32) -> (i32, i32) {
    %c0_i32 = arith.constant 0 : i32
    %c0_i32_0 = arith.constant 0 : i32
    %c0_i32_1 = arith.constant 0 : i32
    return %c0_i32, %c0_i32_0 : i32, i32
  }
  func.func @transform_3(%arg0: i32) -> (i32, i32) {
    %c0_i32 = arith.constant 0 : i32
    %c0_i32_0 = arith.constant 0 : i32
    %c0_i32_1 = arith.constant 0 : i32
    return %c0_i32, %c0_i32_0 : i32, i32
  }
  func.func @transform_4(%arg0: i32) -> (i32, i32) {
    %c0_i32 = arith.constant 0 : i32
    %c0_i32_0 = arith.constant 0 : i32
    %c0_i32_1 = arith.constant 0 : i32
    return %c0_i32, %c0_i32_0 : i32, i32
  }
  func.func @transform_5(%arg0: i32) -> (i32, i32) {
    %c0_i32 = arith.constant 0 : i32
    %c0_i32_0 = arith.constant 0 : i32
    return %arg0, %c0_i32 : i32, i32
  }
}

</mosaic_0001>

<llo_original>
// kernel: embedding_forward.1
$region0: #{embedding_forward.1}
  #allocation0 [shape = 'u32[]', space=smem, size = 0x4, offset = 0x4, fixed_abs, tag = 'smem constant byte address 0x4 - core index']
  #allocation1 [shape = 'u32[72,128]{1,0:T(1,128)}', space=vmem, size = 0x9000, scoped, tag = 'internal scratch']
  %s0 = inlined_call_operand.vmem [shape: f32[8,4], index: 0, kind: input, shape index: {}]
  %s1 = inlined_call_operand.vmem [shape: f32[4,128], index: 1, kind: input, shape index: {}]
  %s2 = inlined_call_operand.vmem [shape: f32[1,128], index: 2, kind: input, shape index: {}]
  %s3 = inlined_call_operand.vmem [shape: f32[128,128], index: 3, kind: input, shape index: {}]
  %s4 = inlined_call_operand.vmem [shape: f32[1,128], index: 4, kind: input, shape index: {}]
  %s5 = inlined_call_operand.hbm [shape: f32[8,128], index: 5, kind: output, shape index: {}]
  %s6 = sld [smem:[#allocation0]]
  $region30: #{embedding_forward.1} parent=0
    _
  %s8 = ssub.s32 1, %s6
  %s9 = scalar_select 0, %s8, %s6
  $region1: #{embedding_forward.1} parent=0
    #allocation2 [shape = 'u8[4096]{0}', space=vmem, size = 0x1000, scoped, tag = 'output window, operand 0, single buffered']
    #allocation3 [shape = 's32[1]{0}', space=sflag, size = 0x4, scoped, tag = 'scoped memory for embedding_forward.1']
    %10 = vsyncpa [#allocation3], 0
    // Predicated region
    $region2: #{embedding_forward.1} parent=1 // pred_check
      _
    $region3: #{embedding_forward.1} parent=1 // pred_check_branch
      %12 = sbr.rel (0) target = $region5
    $region4: #{embedding_forward.1} parent=1 // pred_region
      _
    $region5: #{embedding_forward.1} parent=1 // pred_fallthru
      _
    // Predicated region
    $region6: #{embedding_forward.1} parent=1 // pred_check
      _
    $region7: #{embedding_forward.1} parent=1 // pred_check_branch
      %14 = sbr.rel (0) target = $region9
    $region8: #{embedding_forward.1} parent=1 // pred_region
      _
    $region9: #{embedding_forward.1} parent=1 // pred_fallthru
      _
    // Predicated region
    $region10: #{embedding_forward.1} parent=1 // pred_check
      _
    $region11: #{embedding_forward.1} parent=1 // pred_check_branch
      %16 = sbr.rel (0) target = $region13
    $region12: #{embedding_forward.1} parent=1 // pred_region
      _
    $region13: #{embedding_forward.1} parent=1 // pred_fallthru
      _
    // Predicated region
    $region14: #{embedding_forward.1} parent=1 // pred_check
      _
    $region15: #{embedding_forward.1} parent=1 // pred_check_branch
      %18 = sbr.rel (0) target = $region17
    $region16: #{embedding_forward.1} parent=1 // pred_region
      _
    $region17: #{embedding_forward.1} parent=1 // pred_fallthru
      _
    // Predicated region
    $region18: #{embedding_forward.1} parent=1 // pred_check
      _
    $region19: #{embedding_forward.1} parent=1 // pred_check_branch
      %20 = sbr.rel (0) target = $region21
    $region20: #{embedding_forward.1} parent=1 // pred_region
      _
    $region21: #{embedding_forward.1} parent=1 // pred_fallthru
      _
    %v21 = vld [vmem:[%s0] sm:$0xff]
    %v22 = vld [vmem:[%s1] sm:$0xf]
    %v23 = vld [vmem:[%s2] sm:$0x1]
    %v25 = vperm.slane %v23, 0
    %vm27 = vcmask 31744
    %v29 = vsel %vm27, %v21, 0
    %vm31 = vcmask 1043456
    %v33 = vsel %vm31, %v22, 0
    %35 = vmatpush.msra.mxu0 0.0
    %36 = vmatpush.msra.mxu0 0.0
    %37 = vmatpush.msra.mxu0 0.0
    %38 = vmatpush.msra.mxu0 0.0
    %39 = vmatpush.msra.mxu0 0.0
    %40 = vmatpush.msra.mxu0 0.0
    %41 = vmatpush.msra.mxu0 0.0
    %42 = vmatpush.msra.mxu0 0.0
    %43 = vmatpush.msra.mxu0 0.0
    %44 = vmatpush.msra.mxu0 0.0
    %45 = vmatpush.msra.mxu0 0.0
    %46 = vmatpush.msra.mxu0 0.0
    %47 = vmatpush.msra.mxu0 0.0
    %48 = vmatpush.msra.mxu0 0.0
    %49 = vmatpush.msra.mxu0 0.0
    %50 = vmatpush.msra.mxu0 %v33
    %51 = vmatmul.f32.gmra.mxu0 %v29
    %v52 = vpop.f32.mrf.mxu0
    %v53 = vadd.f32 %v25, %v52
    %54 = vdwg.mxu0
    %v55 = vmul.f32 %v53, 0.5
    %v56 = vmul.f32 %v53, 0.70710677
    %v57 = vmul.f32 %v56, %v56
    %v58 = vmin.f32 16.0, %v57
    %v59 = vmul.f32 %v58, 2.1237322e-06
    %v60 = vadd.f32 %v59, 0.00028619796
    %v61 = vmul.f32 %v58, %v60
    %v62 = vadd.f32 %v61, 0.0036580483
    %v63 = vmul.f32 %v58, %v62
    %v64 = vadd.f32 %v63, 0.05243302
    %v65 = vmul.f32 %v58, %v64
    %v66 = vadd.f32 %v65, 0.18741608
    %v67 = vmul.f32 %v58, %v66
    %v68 = vadd.f32 %v67, 1.1283791
    %v69 = vmul.f32 %v56, %v68
    %v70 = vmul.f32 %v58, 3.8918573e-05
    %v71 = vadd.f32 %v70, 0.001143296
    %v72 = vmul.f32 %v58, %v71
    %v73 = vadd.f32 %v72, 0.014752088
    %v74 = vmul.f32 %v58, %v73
    %v75 = vadd.f32 %v74, 0.112945676
    %v76 = vmul.f32 %v58, %v75
    %v77 = vadd.f32 %v76, 0.4994258
    %v78 = vmul.f32 %v58, %v77
    %v79 = vadd.f32 %v78, 1.0
    %v80 = vrcp.pop %v79
    %v81 = vmul.f32 %v79, %v80
    %v82 = vsub.f32 1.0, %v81
    %v83 = vmul.f32 %v80, %v82
    %v84 = vadd.f32 %v80, %v83
    %vm85 = vweird.f32 %v79
    %vm86 = vweird.f32 %v80
    %vm87 = vmor %vm85, %vm86
    %v88 = vsel %vm87, %v80, %v84
    %v89 = vand.u32 2147483647, %v79
    %vm90 = vcmp.eq.f32.partialorder %v89, 8.507059e+37
    %v91 = vand.u32 %v79, 2147483648
    %v92 = vor.u32 1.1754944e-38, %v91
    %v93 = vsel %vm90, %v92, %v88
    %v94 = vmul.f32 %v69, %v93
    %v95 = vmin.f32 %v94, 1.0
    %v96 = vmax.f32 %v95, -1.0
    %v97 = vadd.f32 %v96, 1.0
    %v98 = vmul.f32 %v55, %v97
    %v99 = vld [vmem:[%s3] sm:$0xff]
    %v100 = vld [vmem:[%s3 + $0x8] sm:$0xff]
    %v101 = vld [vmem:[%s3 + $0x10] sm:$0xff]
    %v102 = vld [vmem:[%s3 + $0x18] sm:$0xff]
    %v103 = vld [vmem:[%s3 + $0x20] sm:$0xff]
    %v104 = vld [vmem:[%s3 + $0x28] sm:$0xff]
    %v105 = vld [vmem:[%s3 + $0x30] sm:$0xff]
    %v106 = vld [vmem:[%s3 + $0x38] sm:$0xff]
    %v107 = vld [vmem:[%s3 + $0x40] sm:$0xff]
    %v108 = vld [vmem:[%s3 + $0x48] sm:$0xff]
    %v109 = vld [vmem:[%s3 + $0x50] sm:$0xff]
    %v110 = vld [vmem:[%s3 + $0x58] sm:$0xff]
    %v111 = vld [vmem:[%s3 + $0x60] sm:$0xff]
    %v112 = vld [vmem:[%s3 + $0x68] sm:$0xff]
    %v113 = vld [vmem:[%s3 + $0x70] sm:$0xff]
    %v114 = vld [vmem:[%s3 + $0x78] sm:$0xff]
    %v115 = vld [vmem:[%s4] sm:$0x1]
    %v117 = vperm.slane %v115, 0
    %119 = vmatpush.msra.mxu0 %v114
    %120 = vmatpush.msra.mxu0 %v113
    %121 = vmatpush.msra.mxu0 %v112
    %122 = vmatpush.msra.mxu0 %v111
    %123 = vmatpush.msra.mxu0 %v110
    %124 = vmatpush.msra.mxu0 %v109
    %125 = vmatpush.msra.mxu0 %v108
    %126 = vmatpush.msra.mxu0 %v107
    %127 = vmatpush.msra.mxu0 %v106
    %128 = vmatpush.msra.mxu0 %v105
    %129 = vmatpush.msra.mxu0 %v104
    %130 = vmatpush.msra.mxu0 %v103
    %131 = vmatpush.msra.mxu0 %v102
    %132 = vmatpush.msra.mxu0 %v101
    %133 = vmatpush.msra.mxu0 %v100
    %134 = vmatpush.msra.mxu0 %v99
    %135 = vmatmul.f32.gmra.mxu0 %v98
    %v136 = vpop.f32.mrf.mxu0
    %v137 = vadd.f32 %v117, %v136
    %138 = vdwg.mxu0
    %139 = vst [vmem:[#allocation2] sm:$0xff] %v137
    // Predicated region
    $region22: #{embedding_forward.1} parent=1 // pred_check
      _
    $region23: #{embedding_forward.1} parent=1 // pred_check_branch
      %141 = sbr.rel (0) target = $region25
    $region24: #{embedding_forward.1} parent=1 // pred_region
      %143 = vsyncadd [#allocation3], 0
      %s145 = sshll.u32 [#allocation2], 4
      %s146 = int_to_ptr.vmem [resolvable:$true] %s145
      %s147 = sshll.u32 %s5, 4
      %s148 = int_to_ptr.hbm [resolvable:$true] %s147
      %150 = dma.vmem_to_hbm [thread:$0]  %s146, 128, %s148, [#allocation3]
    $region25: #{embedding_forward.1} parent=1 // pred_fallthru
      _
    // Predicated region
    $region26: #{embedding_forward.1} parent=1 // pred_check
      _
    $region27: #{embedding_forward.1} parent=1 // pred_check_branch
      %152 = sbr.rel (0) target = $region29
    $region28: #{embedding_forward.1} parent=1 // pred_region
      %154 = dma.done [#allocation3], 128
    $region29: #{embedding_forward.1} parent=1 // pred_fallthru
      _
    %155 = vsyncpa [#allocation3], 1

</llo_original>
